<compile_context>
chip_gen: v5e
topology: v5e:2x2
jax: 0.10.0
libtpu: 0.0.40
codegen_flags: <defaults>
</compile_context>

<pallas_src>
import math
import functools

import jax
import jax.numpy as jnp
from jax.experimental import pallas as pl
from jax.experimental.pallas import tpu as pltpu


# ---------------------------------------------------------------------------
# Kernels
# ---------------------------------------------------------------------------
def _pe_add_kernel(x_ref, pe_ref, o_ref):
    # x_ref: [tile_s, B, D], pe_ref: [tile_s, 1, D] -> o_ref: [tile_s, B, D]
    o_ref[...] = (x_ref[...] + pe_ref[...]).astype(o_ref.dtype)


def _pe_dropout_kernel_tpu(seed_ref, x_ref, pe_ref, o_ref, *, thresh, inv_keep):
    # Inverted dropout with the TPU hardware PRNG (no extra HBM traffic).
    # TODO(synk): RNG stream differs from torch.nn.Dropout (distribution matches).
    pltpu.prng_seed(seed_ref[0] + pl.program_id(0))      # distinct stream per block
    bits = pltpu.bitcast(pltpu.prng_random_bits(x_ref.shape), jnp.uint32)
    y = x_ref[...] + pe_ref[...]
    keep = bits >= jnp.uint32(thresh)                    # integer threshold compare
    scale = jnp.where(keep, jnp.asarray(inv_keep, y.dtype),
                      jnp.asarray(0.0, y.dtype))         # scale folded into select
    o_ref[...] = (y * scale).astype(o_ref.dtype)


def _pe_dropout_kernel_bits(bits_ref, x_ref, pe_ref, o_ref, *, thresh, inv_keep):
    # Portable fallback: random bits generated in the wrapper and streamed in.
    y = x_ref[...] + pe_ref[...]
    keep = bits_ref[...] >= jnp.uint32(thresh)
    scale = jnp.where(keep, jnp.asarray(inv_keep, y.dtype),
                      jnp.asarray(0.0, y.dtype))
    o_ref[...] = (y * scale).astype(o_ref.dtype)


# ---------------------------------------------------------------------------
# Wrapper
# ---------------------------------------------------------------------------
def make_pe_table(d_model, max_len=5000, dtype=jnp.float32):
    """Deterministic sinusoidal table, identical to the torch __init__."""
    position = jnp.arange(max_len, dtype=jnp.float32)[:, None]            # [L, 1]
    div_term = jnp.exp(jnp.arange(0, d_model, 2, dtype=jnp.float32)
                       * (-math.log(10000.0) / d_model))                  # [D/2]
    pe = jnp.zeros((max_len, d_model), dtype=jnp.float32)
    pe = pe.at[:, 0::2].set(jnp.sin(position * div_term))
    pe = pe.at[:, 1::2].set(jnp.cos(position * div_term))
    return pe.astype(dtype)                                               # [L, D]


def _pick_tile_s(S, B, D, x_itemsize, extra_bytes_per_elem=0,
                 budget_bytes=4 * 1024 * 1024):
    """Largest seq tile whose streamed block bytes (x + out + pe [+ bits]) fit
    the budget.  ~4 MiB per step -> ~8 MiB double-buffered: safe for v5e's
    16 MiB scoped-VMEM default and v7x's 32 MiB / 64 MiB physical."""
    per_row = B * D * (2 * x_itemsize + extra_bytes_per_elem) + D * x_itemsize
    tile_s = max(1, min(S, budget_bytes // max(per_row, 1)))
    if tile_s >= 8:
        tile_s = (tile_s // 8) * 8      # sublane-friendly row counts
    return tile_s


def positional_encoding(x, pe_table, *, p_drop=0.1, training=False, rng_key=None):
    """x: [S, B, D] -> [S, B, D].  pe_table: [max_len, D] from make_pe_table."""
    S, B, D = x.shape
    max_len = pe_table.shape[0]
    assert S <= max_len, "sequence longer than positional-encoding table"

    # [max_len, 1, D]: lane-dense over D, broadcasts over batch in the kernel,
    # seq window selected via index_map (no wrapper slice), cast to x.dtype so
    # bf16 inputs stay bf16 end-to-end.
    pe3 = pe_table.reshape(max_len, 1, D).astype(x.dtype)

    use_dropout = bool(training) and float(p_drop) > 0.0
    if use_dropout and rng_key is None:
        raise ValueError("training-mode dropout needs rng_key (vary it per step)")
    on_tpu = jax.default_backend() == "tpu"

    itemsize = jnp.dtype(x.dtype).itemsize
    extra = 4 if (use_dropout and not on_tpu) else 0      # external uint32 bits
    tile_s = _pick_tile_s(S, B, D, itemsize, extra)
    grid = (pl.cdiv(S, tile_s),)

    out_shape = jax.ShapeDtypeStruct((S, B, D), x.dtype)
    cparams = pltpu.CompilerParams(dimension_semantics=("parallel",))

    if not use_dropout:
        return pl.pallas_call(
            _pe_add_kernel,
            out_shape=out_shape,
            grid_spec=pltpu.PrefetchScalarGridSpec(
                num_scalar_prefetch=0,
                grid=grid,
                in_specs=[
                    pl.BlockSpec((tile_s, B, D), lambda i: (i, 0, 0)),
                    pl.BlockSpec((tile_s, 1, D), lambda i: (i, 0, 0)),
                ],
                out_specs=pl.BlockSpec((tile_s, B, D), lambda i: (i, 0, 0)),
            ),
            compiler_params=cparams,
        )(x, pe3)

    thresh = min(int(round(float(p_drop) * 2.0 ** 32)), 2 ** 32 - 1)
    inv_keep = 1.0 / (1.0 - float(p_drop))

    if on_tpu:
        # Hardware-PRNG path: only a scalar seed crosses the pallas_call boundary.
        seed = jax.random.randint(rng_key, (1,), 0, jnp.iinfo(jnp.int32).max,
                                  dtype=jnp.int32)
        kernel = functools.partial(_pe_dropout_kernel_tpu,
                                   thresh=thresh, inv_keep=inv_keep)
        return pl.pallas_call(
            kernel,
            out_shape=out_shape,
            grid_spec=pltpu.PrefetchScalarGridSpec(
                num_scalar_prefetch=1,            # seed lands in SMEM
                grid=grid,
                in_specs=[
                    pl.BlockSpec((tile_s, B, D), lambda i, seed_ref: (i, 0, 0)),
                    pl.BlockSpec((tile_s, 1, D), lambda i, seed_ref: (i, 0, 0)),
                ],
                out_specs=pl.BlockSpec((tile_s, B, D),
                                       lambda i, seed_ref: (i, 0, 0)),
            ),
            compiler_params=cparams,
        )(seed, x, pe3)

    # Portable path (no TPU hardware PRNG, e.g. interpret mode on CPU).
    bits = jax.random.bits(rng_key, (S, B, D), dtype=jnp.uint32)
    kernel = functools.partial(_pe_dropout_kernel_bits,
                               thresh=thresh, inv_keep=inv_keep)
    return pl.pallas_call(
        kernel,
        out_shape=out_shape,
        grid_spec=pltpu.PrefetchScalarGridSpec(
            num_scalar_prefetch=0,
            grid=grid,
            in_specs=[
                pl.BlockSpec((tile_s, B, D), lambda i: (i, 0, 0)),
                pl.BlockSpec((tile_s, B, D), lambda i: (i, 0, 0)),
                pl.BlockSpec((tile_s, 1, D), lambda i: (i, 0, 0)),
            ],
            out_specs=pl.BlockSpec((tile_s, B, D), lambda i: (i, 0, 0)),
        ),
        compiler_params=cparams,
    )(bits, x, pe3)


# ---------------------------------------------------------------------------
# Demo
# ---------------------------------------------------------------------------
if __name__ == "__main__":
    S, B, D = 8, 2, 32                       # seq_len, batch, d_model
    key = jax.random.PRNGKey(0)
    kx, kdrop = jax.random.split(key)
    x = jax.random.normal(kx, (S, B, D), dtype=jnp.float32)

    pe_table = make_pe_table(D, max_len=5000)

    # Eval mode (dropout = identity): check against a plain-JAX reference.
    out_eval = jax.block_until_ready(
        positional_encoding(x, pe_table, p_drop=0.1, training=False))
    ref = x + pe_table[:S][:, None, :]
    assert out_eval.shape == (S, B, D)
    assert jnp.allclose(out_eval, ref, atol=1e-6), "eval-mode mismatch"

    # Training mode: inverted dropout — every element is 0 or ref/(1-p).
    p = 0.1
    out_train = jax.block_until_ready(
        positional_encoding(x, pe_table, p_drop=p, training=True, rng_key=kdrop))
    assert out_train.shape == (S, B, D)
    scaled = ref / (1.0 - p)
    ok = (jnp.isclose(out_train, scaled, rtol=1e-5, atol=1e-5)
          | jnp.isclose(out_train, 0.0, atol=1e-6))
    assert bool(jnp.all(ok)), "training-mode dropout mismatch"

    print("KERNEL_OK")
</pallas_src>

<mosaic_0001>
module attributes {stable_mosaic.version = 11 : i64} {
  func.func @_pe_add_kernel(%arg0: i32, %arg1: memref<8x2x32xf32, #tpu.memory_space<vmem>>, %arg2: memref<8x1x32xf32, #tpu.memory_space<vmem>>, %arg3: memref<8x2x32xf32, #tpu.memory_space<vmem>>) attributes {dimension_semantics = [#tpu.dimension_semantics<parallel>], iteration_bounds = array<i64: 1>, scalar_prefetch = 0 : i64, scratch_operands = 0 : i64, tpu.core_type = #tpu.core_type<tc>, window_params = [{transform_indices = @transform_0, window_bounds = array<i64: 8, 2, 32>}, {transform_indices = @transform_1, window_bounds = array<i64: 8, 1, 32>}, {transform_indices = @transform_2, window_bounds = array<i64: 8, 2, 32>}]} {
    %c0 = arith.constant 0 : index
    %c0_0 = arith.constant 0 : index
    %c0_1 = arith.constant 0 : index
    %0 = vector.load %arg1[%c0, %c0_0, %c0_1] : memref<8x2x32xf32, #tpu.memory_space<vmem>>, vector<8x2x32xf32>
    %c0_2 = arith.constant 0 : index
    %c0_3 = arith.constant 0 : index
    %c0_4 = arith.constant 0 : index
    %1 = vector.load %arg2[%c0_2, %c0_3, %c0_4] : memref<8x1x32xf32, #tpu.memory_space<vmem>>, vector<8x1x32xf32>
    %2 = vector.broadcast %1 : vector<8x1x32xf32> to vector<8x2x32xf32>
    %3 = arith.addf %0, %2 : vector<8x2x32xf32>
    %c0_5 = arith.constant 0 : index
    %c0_6 = arith.constant 0 : index
    %c0_7 = arith.constant 0 : index
    %4 = vector.load %arg3[%c0_5, %c0_6, %c0_7] : memref<8x2x32xf32, #tpu.memory_space<vmem>>, vector<8x2x32xf32>
    tpu.vector_store %arg3[%c0_5, %c0_6, %c0_7], %3 {strides = array<i32>} : memref<8x2x32xf32, #tpu.memory_space<vmem>>, vector<8x2x32xf32>,
    return
  }
  func.func @transform_0(%arg0: i32) -> (i32, i32, i32) {
    %c0_i32 = arith.constant 0 : i32
    %c0_i32_0 = arith.constant 0 : i32
    %c0_i32_1 = arith.constant 0 : i32
    return %arg0, %c0_i32, %c0_i32_0 : i32, i32, i32
  }
  func.func @transform_1(%arg0: i32) -> (i32, i32, i32) {
    %c0_i32 = arith.constant 0 : i32
    %c0_i32_0 = arith.constant 0 : i32
    %c0_i32_1 = arith.constant 0 : i32
    return %arg0, %c0_i32, %c0_i32_0 : i32, i32, i32
  }
  func.func @transform_2(%arg0: i32) -> (i32, i32, i32) {
    %c0_i32 = arith.constant 0 : i32
    %c0_i32_0 = arith.constant 0 : i32
    %c0_i32_1 = arith.constant 0 : i32
    return %arg0, %c0_i32, %c0_i32_0 : i32, i32, i32
  }
}

</mosaic_0001>

<llo_original>
// kernel: tpu_custom_call.1
$region0: #{tpu_custom_call.1}
  #allocation0 [shape = 'u32[]', space=smem, size = 0x4, offset = 0x4, fixed_abs, tag = 'smem constant byte address 0x4 - core index']
  #allocation1 [shape = 'u32[72,128]{1,0:T(1,128)}', space=vmem, size = 0x9000, scoped, tag = 'internal scratch']
  %s0 = inlined_call_operand.vmem [shape: f32[8,2,32], index: 0, kind: input, shape index: {}]
  %s1 = inlined_call_operand.vmem [shape: f32[5000,1,32], index: 1, kind: input, shape index: {}]
  %s2 = inlined_call_operand.hbm [shape: f32[8,2,32], index: 2, kind: output, shape index: {}]
  %s3 = sld [smem:[#allocation0]]
  $region18: #{tpu_custom_call.1} parent=0
    _
  %s5 = ssub.s32 1, %s3
  %s6 = scalar_select 0, %s5, %s3
  $region1: #{tpu_custom_call.1} parent=0
    #allocation2 [shape = 'u8[8192]{0}', space=vmem, size = 0x2000, scoped, tag = 'output window, operand 0, single buffered']
    #allocation3 [shape = 's32[1]{0}', space=sflag, size = 0x4, scoped, tag = 'scoped memory for tpu_custom_call.1']
    %7 = vsyncpa [#allocation3], 0
    // Predicated region
    $region2: #{tpu_custom_call.1} parent=1 // pred_check
      _
    $region3: #{tpu_custom_call.1} parent=1 // pred_check_branch
      %9 = sbr.rel (0) target = $region5
    $region4: #{tpu_custom_call.1} parent=1 // pred_region
      _
    $region5: #{tpu_custom_call.1} parent=1 // pred_fallthru
      _
    // Predicated region
    $region6: #{tpu_custom_call.1} parent=1 // pred_check
      _
    $region7: #{tpu_custom_call.1} parent=1 // pred_check_branch
      %11 = sbr.rel (0) target = $region9
    $region8: #{tpu_custom_call.1} parent=1 // pred_region
      _
    $region9: #{tpu_custom_call.1} parent=1 // pred_fallthru
      _
    %v12 = vld [vmem:[%s0] sm:$0x3]
    %v13 = vld [vmem:[%s0 + $0x2] sm:$0x3]
    %v14 = vld [vmem:[%s0 + $0x4] sm:$0x3]
    %v15 = vld [vmem:[%s0 + $0x6] sm:$0x3]
    %v16 = vld [vmem:[%s0 + $0x8] sm:$0x3]
    %v17 = vld [vmem:[%s0 + $0xa] sm:$0x3]
    %v18 = vld [vmem:[%s0 + $0xc] sm:$0x3]
    %v19 = vld [vmem:[%s0 + $0xe] sm:$0x3]
    %v20 = vld [vmem:[%s1] sm:$0x1]
    %v21 = vld [vmem:[%s1 + $0x1] sm:$0x1]
    %v22 = vld [vmem:[%s1 + $0x2] sm:$0x1]
    %v23 = vld [vmem:[%s1 + $0x3] sm:$0x1]
    %v24 = vld [vmem:[%s1 + $0x4] sm:$0x1]
    %v25 = vld [vmem:[%s1 + $0x5] sm:$0x1]
    %v26 = vld [vmem:[%s1 + $0x6] sm:$0x1]
    %v27 = vld [vmem:[%s1 + $0x7] sm:$0x1]
    %v36 = vperm.slane %v20, 0
    %v37 = vperm.slane %v21, 0
    %v38 = vperm.slane %v22, 0
    %v39 = vperm.slane %v23, 0
    %v40 = vperm.slane %v24, 0
    %v41 = vperm.slane %v25, 0
    %v42 = vperm.slane %v26, 0
    %v43 = vperm.slane %v27, 0
    %v52 = vadd.f32 %v12, %v36
    %v53 = vadd.f32 %v13, %v37
    %v54 = vadd.f32 %v14, %v38
    %v55 = vadd.f32 %v15, %v39
    %v56 = vadd.f32 %v16, %v40
    %v57 = vadd.f32 %v17, %v41
    %v58 = vadd.f32 %v18, %v42
    %v59 = vadd.f32 %v19, %v43
    %vm60 = vcmask 254976
    %61 = vst.msk [vmem:[#allocation2] sm:$0x3] %vm60, %v52
    %62 = vst.msk [vmem:[#allocation2 + $0x2] sm:$0x3] %vm60, %v53
    %63 = vst.msk [vmem:[#allocation2 + $0x4] sm:$0x3] %vm60, %v54
    %64 = vst.msk [vmem:[#allocation2 + $0x6] sm:$0x3] %vm60, %v55
    %65 = vst.msk [vmem:[#allocation2 + $0x8] sm:$0x3] %vm60, %v56
    %66 = vst.msk [vmem:[#allocation2 + $0xa] sm:$0x3] %vm60, %v57
    %67 = vst.msk [vmem:[#allocation2 + $0xc] sm:$0x3] %vm60, %v58
    %68 = vst.msk [vmem:[#allocation2 + $0xe] sm:$0x3] %vm60, %v59
    // Predicated region
    $region10: #{tpu_custom_call.1} parent=1 // pred_check
      _
    $region11: #{tpu_custom_call.1} parent=1 // pred_check_branch
      %70 = sbr.rel (0) target = $region13
    $region12: #{tpu_custom_call.1} parent=1 // pred_region
      %72 = vsyncadd [#allocation3], 0
      %s73 = sshll.u32 [#allocation2], 4
      %s74 = int_to_ptr.vmem [resolvable:$true] %s73
      %s75 = sshll.u32 %s2, 4
      %s76 = int_to_ptr.hbm [resolvable:$true] %s75
      %81 = dma.vmem_to_hbm [thread:$0]  %s74, 256, %s76, [#allocation3], 32, 32, 2
    $region13: #{tpu_custom_call.1} parent=1 // pred_fallthru
      _
    // Predicated region
    $region14: #{tpu_custom_call.1} parent=1 // pred_check
      _
    $region15: #{tpu_custom_call.1} parent=1 // pred_check_branch
      %83 = sbr.rel (0) target = $region17
    $region16: #{tpu_custom_call.1} parent=1 // pred_region
      %85 = dma.done [#allocation3], 256
    $region17: #{tpu_custom_call.1} parent=1 // pred_fallthru
      _
    %86 = vsyncpa [#allocation3], 1

</llo_original>
